<compile_context>
chip_gen: v6e
topology: v6e:2x2x1
jax: 0.10.0
libtpu: 0.0.40
codegen_flags: <defaults>
</compile_context>

<pallas_src>
import jax
import jax.numpy as jnp
from jax.experimental import pallas as pl
from jax.experimental.pallas import tpu as pltpu

IN_FEATURES = 88
HIDDEN = 128
N_LAYERS = 6          # 3 linears in embedding stack + 3 in to_loss stack
MAX_TB = 2048         # upper bound on batch tile
NEG_SLOPE = 0.2


def _leaky_relu(x, slope=NEG_SLOPE):
    return jnp.where(x > 0, x, slope * x)


def _round_up(x, m):
    return -(-x // m) * m


def _choose_tb(B, max_tb=MAX_TB):
    """Batch tile: big enough to amortize per-step overhead, >=2 tiles for
    large B so v7x's second TensorCore gets work, always a multiple of 8."""
    if B <= 256:
        return max(8, _round_up(B, 8))           # single small, fully aligned tile
    n_chunks = -(-B // 256)                      # number of 256-row chunks
    tb = 256 * (-(-n_chunks // 2))               # aim for >= 2 tiles
    return min(max_tb, tb)


def synthetic_gradient_kernel(x_ref, w0_ref, wh_ref, w5_ref, b_ref, o_ref):
    """One batch tile: (TB,88) f32 -> 5 MXU matmuls -> lane-dense (1,TB) f32 of l**2."""
    # Layer 0: cast activations to bf16 in-kernel, 88-wide contraction.
    x = x_ref[...].astype(jnp.bfloat16)                                   # (TB, 88)
    h = jnp.dot(x, w0_ref[...], preferred_element_type=jnp.float32)      # (TB, 128)
    h = _leaky_relu(h + b_ref[0:1, :])

    # Layers 1..4: stacked resident hidden weights, bf16 inputs, f32 accumulate.
    for i in range(4):
        h = jnp.dot(h.astype(jnp.bfloat16), wh_ref[i],
                    preferred_element_type=jnp.float32)
        h = _leaky_relu(h + b_ref[i + 1:i + 2, :])

    # Final Linear(128 -> 1), computed lane-dense:
    #   transpose the activation once (XLU, otherwise idle), multiply by the
    #   (128,1) weight column on the VPU and reduce over sublanes -> (1, TB).
    ht = h.T                                                              # (128, TB)
    l = jnp.sum(ht * w5_ref[...], axis=0, keepdims=True)                  # (1, TB)
    l = l + b_ref[5:6, 0:1]                                               # b5 folded in slab
    o_ref[...] = (l * l).astype(o_ref.dtype)


def init_params(key, scale=0.1):
    """Deterministic uniform(-0.1, 0.1) init, mimicking make_initializer(0.1).
    Weights stored (in_features, out_features); biases (1, out_features)."""
    dims = [(IN_FEATURES, HIDDEN), (HIDDEN, HIDDEN), (HIDDEN, HIDDEN),
            (HIDDEN, HIDDEN), (HIDDEN, HIDDEN), (HIDDEN, 1)]
    params = []
    keys = jax.random.split(key, 2 * N_LAYERS)
    for i, (fan_in, fan_out) in enumerate(dims):
        w = jax.random.uniform(keys[2 * i], (fan_in, fan_out),
                               jnp.float32, -scale, scale)
        b = jax.random.uniform(keys[2 * i + 1], (1, fan_out),
                               jnp.float32, -scale, scale)
        params.append((w, b))
    return params


def _pack_params(params):
    """Pack the 6 (w, b) pairs into 4 kernel operands."""
    (w0, b0), (w1, b1), (w2, b2), (w3, b3), (w4, b4), (w5, b5) = params
    w0_bf = w0.astype(jnp.bfloat16)                                       # (88, 128)
    wh = jnp.stack([w1, w2, w3, w4], axis=0).astype(jnp.bfloat16)         # (4, 128, 128)
    w5_col = w5.astype(jnp.float32)                                       # (128, 1)
    # Bias slab: rows 0..4 = hidden biases, row 5 col 0 = b5, rest zero padding.
    b_stack = jnp.zeros((8, HIDDEN), jnp.float32)
    b_stack = b_stack.at[0:5].set(jnp.concatenate([b0, b1, b2, b3, b4], axis=0))
    b_stack = b_stack.at[5, 0].set(b5[0, 0])
    return w0_bf, wh, w5_col, b_stack


def synthetic_gradient_forward(orig_signal, indices, signals, params):
    """Matches SyntheticGradient.forward. orig_signal / signals are unused by forward."""
    del orig_signal, signals
    B = indices.shape[0]
    x = indices.reshape(B, -1).astype(jnp.float32)                        # (B, 88)
    assert x.shape[1] == IN_FEATURES

    tb = _choose_tb(B)
    n_tiles = pl.cdiv(B, tb)
    b_pad = n_tiles * tb
    if b_pad != B:
        # Only pads when B is not already tile-aligned (cheap / skipped otherwise).
        x = jnp.pad(x, ((0, b_pad - B), (0, 0)))

    w0_bf, wh, w5_col, b_stack = _pack_params(params)

    flops = 2 * b_pad * (IN_FEATURES * HIDDEN + 4 * HIDDEN * HIDDEN + HIDDEN)
    bytes_accessed = int(x.size * 4 + w0_bf.size * 2 + wh.size * 2
                         + w5_col.size * 4 + b_stack.size * 4 + b_pad * 4)

    out_row = pl.pallas_call(
        synthetic_gradient_kernel,
        out_shape=jax.ShapeDtypeStruct((1, b_pad), jnp.float32),
        grid=(n_tiles,),
        in_specs=[
            pl.BlockSpec((tb, IN_FEATURES), lambda i: (i, 0)),            # x tile (pipelined)
            pl.BlockSpec((IN_FEATURES, HIDDEN), lambda i: (0, 0)),        # w0 (resident)
            pl.BlockSpec((4, HIDDEN, HIDDEN), lambda i: (0, 0, 0)),       # w1..w4 (resident)
            pl.BlockSpec((HIDDEN, 1), lambda i: (0, 0)),                  # w5 column (resident)
            pl.BlockSpec((8, HIDDEN), lambda i: (0, 0)),                  # biases incl. b5 (resident)
        ],
        out_specs=pl.BlockSpec((1, tb), lambda i: (0, i)),                # lane-dense output row
        compiler_params=pltpu.CompilerParams(
            dimension_semantics=("parallel",)),
        cost_estimate=pl.CostEstimate(flops=int(flops), transcendentals=0,
                                      bytes_accessed=bytes_accessed),
    )(x, w0_bf, wh, w5_col, b_stack)

    return out_row[0, :B].reshape(B, 1)


def reference_forward(indices, params):
    x = indices.reshape(indices.shape[0], -1).astype(jnp.float32)
    for i, (w, b) in enumerate(params):
        x = x @ w + b
        if i != N_LAYERS - 1:
            x = _leaky_relu(x)
    return x ** 2


if __name__ == "__main__":
    key = jax.random.PRNGKey(0)
    k_param, k_sig, k_idx, k_sigs = jax.random.split(key, 4)

    params = init_params(k_param)

    B = 2
    orig_signal = jax.random.normal(k_sig, (B, 1, 128), jnp.float32)   # unused by forward
    indices = jax.random.normal(k_idx, (B, 88), jnp.float32)           # flattens to (B, 88)
    signals = jax.random.normal(k_sigs, (B, 8, 128), jnp.float32)      # unused by forward

    out = synthetic_gradient_forward(orig_signal, indices, signals, params)
    out = jax.block_until_ready(out)

    ref = reference_forward(indices, params)
    assert out.shape == (B, 1), out.shape
    # bf16 weights/activations with f32 accumulation -> loosened tolerance vs f32 reference.
    assert jnp.allclose(out, ref, atol=2e-3, rtol=5e-2), (out, ref)

    print("KERNEL_OK")
</pallas_src>

<mosaic_0001>
module attributes {stable_mosaic.version = 11 : i64} {
  func.func @synthetic_gradient_kernel(%arg0: i32, %arg1: memref<8x88xf32, #tpu.memory_space<vmem>>, %arg2: memref<88x128xbf16, #tpu.memory_space<vmem>>, %arg3: memref<4x128x128xbf16, #tpu.memory_space<vmem>>, %arg4: memref<128x1xf32, #tpu.memory_space<vmem>>, %arg5: memref<8x128xf32, #tpu.memory_space<vmem>>, %arg6: memref<1x8xf32, #tpu.memory_space<vmem>>) attributes {dimension_semantics = [#tpu.dimension_semantics<parallel>], iteration_bounds = array<i64: 1>, scalar_prefetch = 0 : i64, scratch_operands = 0 : i64, tpu.core_type = #tpu.core_type<tc>, window_params = [{transform_indices = @transform_0, window_bounds = array<i64: 8, 88>}, {pipeline_mode = #tpu.pipeline_mode<synchronous>, transform_indices = @transform_1, window_bounds = array<i64: 88, 128>}, {pipeline_mode = #tpu.pipeline_mode<synchronous>, transform_indices = @transform_2, window_bounds = array<i64: 4, 128, 128>}, {pipeline_mode = #tpu.pipeline_mode<synchronous>, transform_indices = @transform_3, window_bounds = array<i64: 128, 1>}, {pipeline_mode = #tpu.pipeline_mode<synchronous>, transform_indices = @transform_4, window_bounds = array<i64: 8, 128>}, {transform_indices = @transform_5, window_bounds = array<i64: 1, 8>}]} {
    %c0 = arith.constant 0 : index
    %c0_0 = arith.constant 0 : index
    %0 = vector.load %arg1[%c0, %c0_0] : memref<8x88xf32, #tpu.memory_space<vmem>>, vector<8x88xf32>
    %1 = arith.truncf %0 : vector<8x88xf32> to vector<8x88xbf16>
    %c0_1 = arith.constant 0 : index
    %c0_2 = arith.constant 0 : index
    %2 = vector.load %arg2[%c0_1, %c0_2] : memref<88x128xbf16, #tpu.memory_space<vmem>>, vector<88x128xbf16>
    %cst = arith.constant dense<0.000000e+00> : vector<8x128xf32>
    %3 = tpu.matmul %1, %2, %cst {dimension_numbers = #tpu.dot_dimension_numbers<[1], [0], [0], [1], [0, 0, 1, 1], [], []>} : vector<8x88xbf16>, vector<88x128xbf16>, vector<8x128xf32> -> vector<8x128xf32>
    %c0_3 = arith.constant 0 : index
    %c0_4 = arith.constant 0 : index
    %4 = vector.load %arg5[%c0_3, %c0_4] : memref<8x128xf32, #tpu.memory_space<vmem>>, vector<1x128xf32>
    %5 = vector.broadcast %4 : vector<1x128xf32> to vector<8x128xf32>
    %6 = arith.addf %3, %5 : vector<8x128xf32>
    %cst_5 = arith.constant 0.000000e+00 : f32
    %7 = vector.broadcast %cst_5 : f32 to vector<8x128xf32>
    %8 = arith.cmpf ogt, %6, %7 : vector<8x128xf32>
    %cst_6 = arith.constant 2.000000e-01 : f32
    %9 = vector.broadcast %cst_6 : f32 to vector<8x128xf32>
    %10 = arith.mulf %9, %6 : vector<8x128xf32>
    %11 = arith.select %8, %6, %10 : vector<8x128xi1>, vector<8x128xf32>
    %12 = arith.truncf %11 : vector<8x128xf32> to vector<8x128xbf16>
    %c0_7 = arith.constant 0 : index
    %c0_8 = arith.constant 0 : index
    %c0_9 = arith.constant 0 : index
    %13 = vector.load %arg3[%c0_7, %c0_8, %c0_9] : memref<4x128x128xbf16, #tpu.memory_space<vmem>>, vector<1x128x128xbf16>
    %14 = vector.shape_cast %13 : vector<1x128x128xbf16> to vector<128x128xbf16>
    %cst_10 = arith.constant dense<0.000000e+00> : vector<8x128xf32>
    %15 = tpu.matmul %12, %14, %cst_10 {dimension_numbers = #tpu.dot_dimension_numbers<[1], [0], [0], [1], [0, 0, 1, 1], [], []>} : vector<8x128xbf16>, vector<128x128xbf16>, vector<8x128xf32> -> vector<8x128xf32>
    %c1 = arith.constant 1 : index
    %c0_11 = arith.constant 0 : index
    %16 = vector.load %arg5[%c1, %c0_11] : memref<8x128xf32, #tpu.memory_space<vmem>>, vector<1x128xf32>
    %17 = vector.broadcast %16 : vector<1x128xf32> to vector<8x128xf32>
    %18 = arith.addf %15, %17 : vector<8x128xf32>
    %cst_12 = arith.constant 0.000000e+00 : f32
    %19 = vector.broadcast %cst_12 : f32 to vector<8x128xf32>
    %20 = arith.cmpf ogt, %18, %19 : vector<8x128xf32>
    %cst_13 = arith.constant 2.000000e-01 : f32
    %21 = vector.broadcast %cst_13 : f32 to vector<8x128xf32>
    %22 = arith.mulf %21, %18 : vector<8x128xf32>
    %23 = arith.select %20, %18, %22 : vector<8x128xi1>, vector<8x128xf32>
    %24 = arith.truncf %23 : vector<8x128xf32> to vector<8x128xbf16>
    %c1_14 = arith.constant 1 : index
    %c0_15 = arith.constant 0 : index
    %c0_16 = arith.constant 0 : index
    %25 = vector.load %arg3[%c1_14, %c0_15, %c0_16] : memref<4x128x128xbf16, #tpu.memory_space<vmem>>, vector<1x128x128xbf16>
    %26 = vector.shape_cast %25 : vector<1x128x128xbf16> to vector<128x128xbf16>
    %cst_17 = arith.constant dense<0.000000e+00> : vector<8x128xf32>
    %27 = tpu.matmul %24, %26, %cst_17 {dimension_numbers = #tpu.dot_dimension_numbers<[1], [0], [0], [1], [0, 0, 1, 1], [], []>} : vector<8x128xbf16>, vector<128x128xbf16>, vector<8x128xf32> -> vector<8x128xf32>
    %c2 = arith.constant 2 : index
    %c0_18 = arith.constant 0 : index
    %28 = vector.load %arg5[%c2, %c0_18] : memref<8x128xf32, #tpu.memory_space<vmem>>, vector<1x128xf32>
    %29 = vector.broadcast %28 : vector<1x128xf32> to vector<8x128xf32>
    %30 = arith.addf %27, %29 : vector<8x128xf32>
    %cst_19 = arith.constant 0.000000e+00 : f32
    %31 = vector.broadcast %cst_19 : f32 to vector<8x128xf32>
    %32 = arith.cmpf ogt, %30, %31 : vector<8x128xf32>
    %cst_20 = arith.constant 2.000000e-01 : f32
    %33 = vector.broadcast %cst_20 : f32 to vector<8x128xf32>
    %34 = arith.mulf %33, %30 : vector<8x128xf32>
    %35 = arith.select %32, %30, %34 : vector<8x128xi1>, vector<8x128xf32>
    %36 = arith.truncf %35 : vector<8x128xf32> to vector<8x128xbf16>
    %c2_21 = arith.constant 2 : index
    %c0_22 = arith.constant 0 : index
    %c0_23 = arith.constant 0 : index
    %37 = vector.load %arg3[%c2_21, %c0_22, %c0_23] : memref<4x128x128xbf16, #tpu.memory_space<vmem>>, vector<1x128x128xbf16>
    %38 = vector.shape_cast %37 : vector<1x128x128xbf16> to vector<128x128xbf16>
    %cst_24 = arith.constant dense<0.000000e+00> : vector<8x128xf32>
    %39 = tpu.matmul %36, %38, %cst_24 {dimension_numbers = #tpu.dot_dimension_numbers<[1], [0], [0], [1], [0, 0, 1, 1], [], []>} : vector<8x128xbf16>, vector<128x128xbf16>, vector<8x128xf32> -> vector<8x128xf32>
    %c3 = arith.constant 3 : index
    %c0_25 = arith.constant 0 : index
    %40 = vector.load %arg5[%c3, %c0_25] : memref<8x128xf32, #tpu.memory_space<vmem>>, vector<1x128xf32>
    %41 = vector.broadcast %40 : vector<1x128xf32> to vector<8x128xf32>
    %42 = arith.addf %39, %41 : vector<8x128xf32>
    %cst_26 = arith.constant 0.000000e+00 : f32
    %43 = vector.broadcast %cst_26 : f32 to vector<8x128xf32>
    %44 = arith.cmpf ogt, %42, %43 : vector<8x128xf32>
    %cst_27 = arith.constant 2.000000e-01 : f32
    %45 = vector.broadcast %cst_27 : f32 to vector<8x128xf32>
    %46 = arith.mulf %45, %42 : vector<8x128xf32>
    %47 = arith.select %44, %42, %46 : vector<8x128xi1>, vector<8x128xf32>
    %48 = arith.truncf %47 : vector<8x128xf32> to vector<8x128xbf16>
    %c3_28 = arith.constant 3 : index
    %c0_29 = arith.constant 0 : index
    %c0_30 = arith.constant 0 : index
    %49 = vector.load %arg3[%c3_28, %c0_29, %c0_30] : memref<4x128x128xbf16, #tpu.memory_space<vmem>>, vector<1x128x128xbf16>
    %50 = vector.shape_cast %49 : vector<1x128x128xbf16> to vector<128x128xbf16>
    %cst_31 = arith.constant dense<0.000000e+00> : vector<8x128xf32>
    %51 = tpu.matmul %48, %50, %cst_31 {dimension_numbers = #tpu.dot_dimension_numbers<[1], [0], [0], [1], [0, 0, 1, 1], [], []>} : vector<8x128xbf16>, vector<128x128xbf16>, vector<8x128xf32> -> vector<8x128xf32>
    %c4 = arith.constant 4 : index
    %c0_32 = arith.constant 0 : index
    %52 = vector.load %arg5[%c4, %c0_32] : memref<8x128xf32, #tpu.memory_space<vmem>>, vector<1x128xf32>
    %53 = vector.broadcast %52 : vector<1x128xf32> to vector<8x128xf32>
    %54 = arith.addf %51, %53 : vector<8x128xf32>
    %cst_33 = arith.constant 0.000000e+00 : f32
    %55 = vector.broadcast %cst_33 : f32 to vector<8x128xf32>
    %56 = arith.cmpf ogt, %54, %55 : vector<8x128xf32>
    %cst_34 = arith.constant 2.000000e-01 : f32
    %57 = vector.broadcast %cst_34 : f32 to vector<8x128xf32>
    %58 = arith.mulf %57, %54 : vector<8x128xf32>
    %59 = arith.select %56, %54, %58 : vector<8x128xi1>, vector<8x128xf32>
    %60 = tpu.transpose %59, [1, 0] : vector<8x128xf32> -> vector<128x8xf32>
    %c0_35 = arith.constant 0 : index
    %c0_36 = arith.constant 0 : index
    %61 = vector.load %arg4[%c0_35, %c0_36] : memref<128x1xf32, #tpu.memory_space<vmem>>, vector<128x1xf32>
    %62 = vector.broadcast %61 : vector<128x1xf32> to vector<128x8xf32>
    %63 = arith.mulf %60, %62 : vector<128x8xf32>
    %cst_37 = arith.constant dense<0.000000e+00> : vector<8xf32>
    %64 = vector.multi_reduction <add>, %63, %cst_37 [0] : vector<128x8xf32> to vector<8xf32>
    %65 = vector.shape_cast %64 : vector<8xf32> to vector<1x8xf32>
    %c5 = arith.constant 5 : index
    %c0_38 = arith.constant 0 : index
    %66 = vector.load %arg5[%c5, %c0_38] : memref<8x128xf32, #tpu.memory_space<vmem>>, vector<1x1xf32>
    %67 = vector.broadcast %66 : vector<1x1xf32> to vector<1x8xf32>
    %68 = arith.addf %65, %67 : vector<1x8xf32>
    %69 = arith.mulf %68, %68 : vector<1x8xf32>
    %c0_39 = arith.constant 0 : index
    %c0_40 = arith.constant 0 : index
    %70 = vector.load %arg6[%c0_39, %c0_40] : memref<1x8xf32, #tpu.memory_space<vmem>>, vector<1x8xf32>
    tpu.vector_store %arg6[%c0_39, %c0_40], %69 {strides = array<i32>} : memref<1x8xf32, #tpu.memory_space<vmem>>, vector<1x8xf32>,
    return
  }
  func.func @transform_0(%arg0: i32) -> (i32, i32) {
    %c0_i32 = arith.constant 0 : i32
    %c0_i32_0 = arith.constant 0 : i32
    return %arg0, %c0_i32 : i32, i32
  }
  func.func @transform_1(%arg0: i32) -> (i32, i32) {
    %c0_i32 = arith.constant 0 : i32
    %c0_i32_0 = arith.constant 0 : i32
    %c0_i32_1 = arith.constant 0 : i32
    return %c0_i32, %c0_i32_0 : i32, i32
  }
  func.func @transform_2(%arg0: i32) -> (i32, i32, i32) {
    %c0_i32 = arith.constant 0 : i32
    %c0_i32_0 = arith.constant 0 : i32
    %c0_i32_1 = arith.constant 0 : i32
    %c0_i32_2 = arith.constant 0 : i32
    return %c0_i32, %c0_i32_0, %c0_i32_1 : i32, i32, i32
  }
  func.func @transform_3(%arg0: i32) -> (i32, i32) {
    %c0_i32 = arith.constant 0 : i32
    %c0_i32_0 = arith.constant 0 : i32
    %c0_i32_1 = arith.constant 0 : i32
    return %c0_i32, %c0_i32_0 : i32, i32
  }
  func.func @transform_4(%arg0: i32) -> (i32, i32) {
    %c0_i32 = arith.constant 0 : i32
    %c0_i32_0 = arith.constant 0 : i32
    %c0_i32_1 = arith.constant 0 : i32
    return %c0_i32, %c0_i32_0 : i32, i32
  }
  func.func @transform_5(%arg0: i32) -> (i32, i32) {
    %c0_i32 = arith.constant 0 : i32
    %c0_i32_0 = arith.constant 0 : i32
    return %c0_i32, %arg0 : i32, i32
  }
}

</mosaic_0001>

<llo_original>
// kernel: tpu_custom_call.1
$region0: #{tpu_custom_call.1}
  #allocation0 [shape = 'u32[]', space=smem, size = 0x4, offset = 0x4, fixed_abs, tag = 'smem constant byte address 0x4 - core index']
  #allocation1 [shape = 'u32[144,128]{1,0:T(1,128)}', space=vmem, size = 0x12000, scoped, tag = 'internal scratch']
  %s0 = inlined_call_operand.vmem [shape: f32[8,88], index: 0, kind: input, shape index: {}]
  %s1 = inlined_call_operand.vmem [shape: bf16[88,128], index: 1, kind: input, shape index: {}]
  %s2 = inlined_call_operand.hbm [shape: bf16[4,128,128], index: 2, kind: input, shape index: {}]
  %s3 = inlined_call_operand.vmem [shape: f32[128,1], index: 3, kind: input, shape index: {}]
  %s4 = inlined_call_operand.vmem [shape: f32[8,128], index: 4, kind: input, shape index: {}]
  %s5 = inlined_call_operand.hbm [shape: f32[1,8], index: 5, kind: output, shape index: {}]
  %s6 = sld [smem:[#allocation0]]
  $region34: #{tpu_custom_call.1} parent=0
    _
  %s8 = ssub.s32 1, %s6
  %s9 = scalar_select 0, %s8, %s6
  $region1: #{tpu_custom_call.1} parent=0
    #allocation2 [shape = 'u8[131072]{0}', space=vmem, size = 0x20000, scoped, tag = 'input window, operand 2, single buffered']
    #allocation3 [shape = 's32[1]{0}', space=sflag, size = 0x4, scoped, tag = 'scoped memory for tpu_custom_call.1']
    #allocation4 [shape = 's32[1]{0}', space=sflag, size = 0x4, scoped, tag = 'scoped memory for tpu_custom_call.1']
    #allocation5 [shape = 'u8[512]{0}', space=vmem, size = 0x400, scoped, tag = 'output window, operand 0, single buffered']
    %10 = vsyncpa [#allocation3], 0
    %11 = vsyncpa [#allocation4], 0
    // Predicated region
    $region2: #{tpu_custom_call.1} parent=1 // pred_check
      _
    $region3: #{tpu_custom_call.1} parent=1 // pred_check_branch
      %13 = sbr.rel (0) target = $region5
    $region4: #{tpu_custom_call.1} parent=1 // pred_region
      _
    $region5: #{tpu_custom_call.1} parent=1 // pred_fallthru
      _
    // Predicated region
    $region6: #{tpu_custom_call.1} parent=1 // pred_check
      _
    $region7: #{tpu_custom_call.1} parent=1 // pred_check_branch
      %15 = sbr.rel (0) target = $region9
    $region8: #{tpu_custom_call.1} parent=1 // pred_region
      _
    $region9: #{tpu_custom_call.1} parent=1 // pred_fallthru
      _
    // Predicated region
    $region10: #{tpu_custom_call.1} parent=1 // pred_check
      _
    $region11: #{tpu_custom_call.1} parent=1 // pred_check_branch
      %17 = sbr.rel (0) target = $region13
    $region12: #{tpu_custom_call.1} parent=1 // pred_region
      %s19 = ssub.s32 4096, 4096
      %20 = vsyncadd [#allocation3], %s19
      %s21 = sshll.u32 [#allocation2], 4
      %s22 = int_to_ptr.vmem [resolvable:$true] %s21
      %27 = dma.hbm_to_vmem [thread:$0]  %s2, 4096, %s22, [#allocation3], 64, 64, 4
    $region13: #{tpu_custom_call.1} parent=1 // pred_fallthru
      _
    // Predicated region
    $region14: #{tpu_custom_call.1} parent=1 // pred_check
      _
    $region15: #{tpu_custom_call.1} parent=1 // pred_check_branch
      %29 = sbr.rel (0) target = $region17
    $region16: #{tpu_custom_call.1} parent=1 // pred_region
      _
    $region17: #{tpu_custom_call.1} parent=1 // pred_fallthru
      _
    // Predicated region
    $region18: #{tpu_custom_call.1} parent=1 // pred_check
      _
    $region19: #{tpu_custom_call.1} parent=1 // pred_check_branch
      %31 = sbr.rel (0) target = $region21
    $region20: #{tpu_custom_call.1} parent=1 // pred_region
      _
    $region21: #{tpu_custom_call.1} parent=1 // pred_fallthru
      _
    // Predicated region
    $region22: #{tpu_custom_call.1} parent=1 // pred_check
      _
    $region23: #{tpu_custom_call.1} parent=1 // pred_check_branch
      %33 = sbr.rel (0) target = $region25
    $region24: #{tpu_custom_call.1} parent=1 // pred_region
      %34 = dma.done [#allocation3], 4096
    $region25: #{tpu_custom_call.1} parent=1 // pred_fallthru
      _
    %v36 = vld [vmem:[%s0] sm:$0xff]
    %v37 = vpack.c.bf16 %v36, %v36
    %v38 = vld [vmem:[%s1] sm:$0xf]
    %v39 = vld [vmem:[%s1 + $0x4] sm:$0xf]
    %v40 = vld [vmem:[%s1 + $0x8] sm:$0xf]
    %v41 = vld [vmem:[%s1 + $0xc] sm:$0xf]
    %v42 = vld [vmem:[%s1 + $0x10] sm:$0xf]
    %v43 = vld [vmem:[%s1 + $0x14] sm:$0xf]
    %v44 = vld [vmem:[%s1 + $0x18] sm:$0xf]
    %v45 = vld [vmem:[%s1 + $0x1c] sm:$0xf]
    %v46 = vld [vmem:[%s1 + $0x20] sm:$0xf]
    %v47 = vld [vmem:[%s1 + $0x24] sm:$0xf]
    %v48 = vld [vmem:[%s1 + $0x28] sm:$0xf]
    %v49 = vld [vmem:[%s4] sm:$0x1]
    %v50 = vlaneseq
    %v51 = vshrl.u32 %v50, 7
    %v52 = vsub.s32 0, %v51
    %v53 = vrot.slane %v49, %v52
    %v65 = vunpack.c.l.b16 %v38
    %v66 = vunpack.c.l.b16 %v39
    %v67 = vunpack.c.l.b16 %v40
    %v68 = vunpack.c.l.b16 %v41
    %v69 = vunpack.c.l.b16 %v42
    %v70 = vunpack.c.l.b16 %v43
    %v71 = vunpack.c.l.b16 %v44
    %v72 = vunpack.c.l.b16 %v45
    %v73 = vunpack.c.l.b16 %v46
    %v74 = vunpack.c.l.b16 %v47
    %v75 = vunpack.c.l.b16 %v48
    %v76 = vpack.c.b16 %v66, %v65
    %v77 = vpack.c.b16 %v68, %v67
    %v78 = vpack.c.b16 %v70, %v69
    %v79 = vpack.c.b16 %v72, %v71
    %v80 = vpack.c.b16 %v74, %v73
    %v81 = vpack.c.b16 %v75, %v75
    %vm87 = vcmask 719872
    %v89 = vsel %vm87, %v37, 0
    %vm91 = vcmask 1043456
    %v93 = vsel %vm91, %v81, 0
    %95 = vmatprep.subr.bf16.mxu0 0
    %96 = vmatpush1.bf16.msra.mxu0 0
    %97 = vmatprep.subr.bf16.mxu0 0
    %98 = vmatpush1.bf16.msra.mxu0 0
    %99 = vmatprep.subr.bf16.mxu0 0
    %100 = vmatpush1.bf16.msra.mxu0 %v93
    %101 = vmatprep.subr.bf16.mxu0 0
    %102 = vmatpush1.bf16.msra.mxu0 %v80
    %103 = vmatprep.subr.bf16.mxu0 0
    %104 = vmatpush1.bf16.msra.mxu0 %v79
    %105 = vmatprep.subr.bf16.mxu0 0
    %106 = vmatpush1.bf16.msra.mxu0 %v78
    %107 = vmatprep.subr.bf16.mxu0 0
    %108 = vmatpush1.bf16.msra.mxu0 %v77
    %109 = vmatprep.subr.bf16.mxu0 0
    %110 = vmatpush1.bf16.msra.mxu0 %v76
    %111 = vmatprep.subr.bf16.mxu0 0
    %112 = vmatpush2.bf16.msra.mxu0 0
    %113 = vmatprep.subr.bf16.mxu0 0
    %114 = vmatpush2.bf16.msra.mxu0 0
    %115 = vmatprep.subr.bf16.mxu0 0
    %116 = vmatpush2.bf16.msra.mxu0 0
    %117 = vmatprep.subr.bf16.mxu0 0
    %118 = vmatpush2.bf16.msra.mxu0 0
    %119 = vmatprep.subr.bf16.mxu0 0
    %120 = vmatpush2.bf16.msra.mxu0 0
    %121 = vmatprep.subr.bf16.mxu0 0
    %122 = vmatpush2.bf16.msra.mxu0 0
    %123 = vmatprep.subr.bf16.mxu0 0
    %124 = vmatpush2.bf16.msra.mxu0 0
    %125 = vmatprep.subr.bf16.mxu0 0
    %126 = vmatpush2.bf16.msra.mxu0 0
    %127 = vmatprep.mubr.bf16.mxu0 0
    %128 = vmatmul.mubr.bf16.gmra.mxu0 %v89
    %v129 = vpop.f32.mrf.mxu0
    %v130 = vadd.f32 %v53, %v129
    %v131 = vpop.f32.mrf.mxu0
    %v132 = vpop.f32.mrf.mxu0
    %v133 = vpop.f32.mrf.mxu0
    %134 = vdwg.mxu0
    %vm135 = vcmp.gt.f32.partialorder %v130, 0.0
    %v136 = vmul.f32 %v130, 0.2
    %v137 = vsel %vm135, %v130, %v136
    %v138 = vpack.c.bf16 %v137, %v137
    %v139 = vld [vmem:[#allocation2] sm:$0xf]
    %v140 = vld [vmem:[#allocation2 + $0x4] sm:$0xf]
    %v141 = vld [vmem:[#allocation2 + $0x8] sm:$0xf]
    %v142 = vld [vmem:[#allocation2 + $0xc] sm:$0xf]
    %v143 = vld [vmem:[#allocation2 + $0x10] sm:$0xf]
    %v144 = vld [vmem:[#allocation2 + $0x14] sm:$0xf]
    %v145 = vld [vmem:[#allocation2 + $0x18] sm:$0xf]
    %v146 = vld [vmem:[#allocation2 + $0x1c] sm:$0xf]
    %v147 = vld [vmem:[#allocation2 + $0x20] sm:$0xf]
    %v148 = vld [vmem:[#allocation2 + $0x24] sm:$0xf]
    %v149 = vld [vmem:[#allocation2 + $0x28] sm:$0xf]
    %v150 = vld [vmem:[#allocation2 + $0x2c] sm:$0xf]
    %v151 = vld [vmem:[#allocation2 + $0x30] sm:$0xf]
    %v152 = vld [vmem:[#allocation2 + $0x34] sm:$0xf]
    %v153 = vld [vmem:[#allocation2 + $0x38] sm:$0xf]
    %v154 = vld [vmem:[#allocation2 + $0x3c] sm:$0xf]
    %v155 = vld [vmem:[%s4 + $0x1] sm:$0x1]
    %v156 = vlaneseq
    %v157 = vshrl.u32 %v156, 7
    %v158 = vsub.s32 0, %v157
    %v159 = vrot.slane %v155, %v158
    %v176 = vunpack.c.l.b16 %v139
    %v177 = vunpack.c.l.b16 %v140
    %v178 = vunpack.c.l.b16 %v141
    %v179 = vunpack.c.l.b16 %v142
    %v180 = vunpack.c.l.b16 %v143
    %v181 = vunpack.c.l.b16 %v144
    %v182 = vunpack.c.l.b16 %v145
    %v183 = vunpack.c.l.b16 %v146
    %v184 = vunpack.c.l.b16 %v147
    %v185 = vunpack.c.l.b16 %v148
    %v186 = vunpack.c.l.b16 %v149
    %v187 = vunpack.c.l.b16 %v150
    %v188 = vunpack.c.l.b16 %v151
    %v189 = vunpack.c.l.b16 %v152
    %v190 = vunpack.c.l.b16 %v153
    %v191 = vunpack.c.l.b16 %v154
    %v192 = vpack.c.b16 %v177, %v176
    %v193 = vpack.c.b16 %v179, %v178
    %v194 = vpack.c.b16 %v181, %v180
    %v195 = vpack.c.b16 %v183, %v182
    %v196 = vpack.c.b16 %v185, %v184
    %v197 = vpack.c.b16 %v187, %v186
    %v198 = vpack.c.b16 %v189, %v188
    %v199 = vpack.c.b16 %v191, %v190
    %208 = vmatprep.subr.bf16.mxu0 0
    %209 = vmatpush1.bf16.msra.mxu0 %v199
    %210 = vmatprep.subr.bf16.mxu0 0
    %211 = vmatpush1.bf16.msra.mxu0 %v198
    %212 = vmatprep.subr.bf16.mxu0 0
    %213 = vmatpush1.bf16.msra.mxu0 %v197
    %214 = vmatprep.subr.bf16.mxu0 0
    %215 = vmatpush1.bf16.msra.mxu0 %v196
    %216 = vmatprep.subr.bf16.mxu0 0
    %217 = vmatpush1.bf16.msra.mxu0 %v195
    %218 = vmatprep.subr.bf16.mxu0 0
    %219 = vmatpush1.bf16.msra.mxu0 %v194
    %220 = vmatprep.subr.bf16.mxu0 0
    %221 = vmatpush1.bf16.msra.mxu0 %v193
    %222 = vmatprep.subr.bf16.mxu0 0
    %223 = vmatpush1.bf16.msra.mxu0 %v192
    %224 = vmatprep.subr.bf16.mxu0 0
    %225 = vmatpush2.bf16.msra.mxu0 0
    %226 = vmatprep.subr.bf16.mxu0 0
    %227 = vmatpush2.bf16.msra.mxu0 0
    %228 = vmatprep.subr.bf16.mxu0 0
    %229 = vmatpush2.bf16.msra.mxu0 0
    %230 = vmatprep.subr.bf16.mxu0 0
    %231 = vmatpush2.bf16.msra.mxu0 0
    %232 = vmatprep.subr.bf16.mxu0 0
    %233 = vmatpush2.bf16.msra.mxu0 0
    %234 = vmatprep.subr.bf16.mxu0 0
    %235 = vmatpush2.bf16.msra.mxu0 0
    %236 = vmatprep.subr.bf16.mxu0 0
    %237 = vmatpush2.bf16.msra.mxu0 0
    %238 = vmatprep.subr.bf16.mxu0 0
    %239 = vmatpush2.bf16.msra.mxu0 0
    %240 = vmatprep.mubr.bf16.mxu0 0
    %241 = vmatmul.mubr.bf16.gmra.mxu0 %v138
    %v242 = vpop.f32.mrf.mxu0
    %v243 = vadd.f32 %v159, %v242
    %v244 = vpop.f32.mrf.mxu0
    %v245 = vpop.f32.mrf.mxu0
    %v246 = vpop.f32.mrf.mxu0
    %247 = vdwg.mxu0
    %vm248 = vcmp.gt.f32.partialorder %v243, 0.0
    %v249 = vmul.f32 %v243, 0.2
    %v250 = vsel %vm248, %v243, %v249
    %v251 = vpack.c.bf16 %v250, %v250
    %s252 = scalar_lea.vmem [#allocation2], 64
    %v253 = vld [vmem:[%s252] sm:$0xf]
    %v254 = vld [vmem:[%s252 + $0x4] sm:$0xf]
    %v255 = vld [vmem:[%s252 + $0x8] sm:$0xf]
    %v256 = vld [vmem:[%s252 + $0xc] sm:$0xf]
    %v257 = vld [vmem:[%s252 + $0x10] sm:$0xf]
    %v258 = vld [vmem:[%s252 + $0x14] sm:$0xf]
    %v259 = vld [vmem:[%s252 + $0x18] sm:$0xf]
    %v260 = vld [vmem:[%s252 + $0x1c] sm:$0xf]
    %v261 = vld [vmem:[%s252 + $0x20] sm:$0xf]
    %v262 = vld [vmem:[%s252 + $0x24] sm:$0xf]
    %v263 = vld [vmem:[%s252 + $0x28] sm:$0xf]
    %v264 = vld [vmem:[%s252 + $0x2c] sm:$0xf]
    %v265 = vld [vmem:[%s252 + $0x30] sm:$0xf]
    %v266 = vld [vmem:[%s252 + $0x34] sm:$0xf]
    %v267 = vld [vmem:[%s252 + $0x38] sm:$0xf]
    %v268 = vld [vmem:[%s252 + $0x3c] sm:$0xf]
    %v269 = vld [vmem:[%s4 + $0x2] sm:$0x1]
    %v270 = vlaneseq
    %v271 = vshrl.u32 %v270, 7
    %v272 = vsub.s32 0, %v271
    %v273 = vrot.slane %v269, %v272
    %v290 = vunpack.c.l.b16 %v253
    %v291 = vunpack.c.l.b16 %v254
    %v292 = vunpack.c.l.b16 %v255
    %v293 = vunpack.c.l.b16 %v256
    %v294 = vunpack.c.l.b16 %v257
    %v295 = vunpack.c.l.b16 %v258
    %v296 = vunpack.c.l.b16 %v259
    %v297 = vunpack.c.l.b16 %v260
    %v298 = vunpack.c.l.b16 %v261
    %v299 = vunpack.c.l.b16 %v262
    %v300 = vunpack.c.l.b16 %v263
    %v301 = vunpack.c.l.b16 %v264
    %v302 = vunpack.c.l.b16 %v265
    %v303 = vunpack.c.l.b16 %v266
    %v304 = vunpack.c.l.b16 %v267
    %v305 = vunpack.c.l.b16 %v268
    %v306 = vpack.c.b16 %v291, %v290
    %v307 = vpack.c.b16 %v293, %v292
    %v308 = vpack.c.b16 %v295, %v294
    %v309 = vpack.c.b16 %v297, %v296
    %v310 = vpack.c.b16 %v299, %v298
    %v311 = vpack.c.b16 %v301, %v300
    %v312 = vpack.c.b16 %v303, %v302
    %v313 = vpack.c.b16 %v305, %v304
    %322 = vmatprep.subr.bf16.mxu0 0
    %323 = vmatpush1.bf16.msra.mxu0 %v313
    %324 = vmatprep.subr.bf16.mxu0 0
    %325 = vmatpush1.bf16.msra.mxu0 %v312
    %326 = vmatprep.subr.bf16.mxu0 0
    %327 = vmatpush1.bf16.msra.mxu0 %v311
    %328 = vmatprep.subr.bf16.mxu0 0
    %329 = vmatpush1.bf16.msra.mxu0 %v310
    %330 = vmatprep.subr.bf16.mxu0 0
    %331 = vmatpush1.bf16.msra.mxu0 %v309
    %332 = vmatprep.subr.bf16.mxu0 0
    %333 = vmatpush1.bf16.msra.mxu0 %v308
    %334 = vmatprep.subr.bf16.mxu0 0
    %335 = vmatpush1.bf16.msra.mxu0 %v307
    %336 = vmatprep.subr.bf16.mxu0 0
    %337 = vmatpush1.bf16.msra.mxu0 %v306
    %338 = vmatprep.subr.bf16.mxu0 0
    %339 = vmatpush2.bf16.msra.mxu0 0
    %340 = vmatprep.subr.bf16.mxu0 0
    %341 = vmatpush2.bf16.msra.mxu0 0
    %342 = vmatprep.subr.bf16.mxu0 0
    %343 = vmatpush2.bf16.msra.mxu0 0
    %344 = vmatprep.subr.bf16.mxu0 0
    %345 = vmatpush2.bf16.msra.mxu0 0
    %346 = vmatprep.subr.bf16.mxu0 0
    %347 = vmatpush2.bf16.msra.mxu0 0
    %348 = vmatprep.subr.bf16.mxu0 0
    %349 = vmatpush2.bf16.msra.mxu0 0
    %350 = vmatprep.subr.bf16.mxu0 0
    %351 = vmatpush2.bf16.msra.mxu0 0
    %352 = vmatprep.subr.bf16.mxu0 0
    %353 = vmatpush2.bf16.msra.mxu0 0
    %354 = vmatprep.mubr.bf16.mxu0 0
    %355 = vmatmul.mubr.bf16.gmra.mxu0 %v251
    %v356 = vpop.f32.mrf.mxu0
    %v357 = vadd.f32 %v273, %v356
    %v358 = vpop.f32.mrf.mxu0
    %v359 = vpop.f32.mrf.mxu0
    %v360 = vpop.f32.mrf.mxu0
    %361 = vdwg.mxu0
    %vm362 = vcmp.gt.f32.partialorder %v357, 0.0
    %v363 = vmul.f32 %v357, 0.2
    %v364 = vsel %vm362, %v357, %v363
    %v365 = vpack.c.bf16 %v364, %v364
    %s366 = scalar_lea.vmem [#allocation2], 128
    %v367 = vld [vmem:[%s366] sm:$0xf]
    %v368 = vld [vmem:[%s366 + $0x4] sm:$0xf]
    %v369 = vld [vmem:[%s366 + $0x8] sm:$0xf]
    %v370 = vld [vmem:[%s366 + $0xc] sm:$0xf]
    %v371 = vld [vmem:[%s366 + $0x10] sm:$0xf]
    %v372 = vld [vmem:[%s366 + $0x14] sm:$0xf]
    %v373 = vld [vmem:[%s366 + $0x18] sm:$0xf]
    %v374 = vld [vmem:[%s366 + $0x1c] sm:$0xf]
    %v375 = vld [vmem:[%s366 + $0x20] sm:$0xf]
    %v376 = vld [vmem:[%s366 + $0x24] sm:$0xf]
    %v377 = vld [vmem:[%s366 + $0x28] sm:$0xf]
    %v378 = vld [vmem:[%s366 + $0x2c] sm:$0xf]
    %v379 = vld [vmem:[%s366 + $0x30] sm:$0xf]
    %v380 = vld [vmem:[%s366 + $0x34] sm:$0xf]
    %v381 = vld [vmem:[%s366 + $0x38] sm:$0xf]
    %v382 = vld [vmem:[%s366 + $0x3c] sm:$0xf]
    %v383 = vld [vmem:[%s4 + $0x3] sm:$0x1]
    %v384 = vlaneseq
    %v385 = vshrl.u32 %v384, 7
    %v386 = vsub.s32 0, %v385
    %v387 = vrot.slane %v383, %v386
    %v404 = vunpack.c.l.b16 %v367
    %v405 = vunpack.c.l.b16 %v368
    %v406 = vunpack.c.l.b16 %v369
    %v407 = vunpack.c.l.b16 %v370
    %v408 = vunpack.c.l.b16 %v371
    %v409 = vunpack.c.l.b16 %v372
    %v410 = vunpack.c.l.b16 %v373
    %v411 = vunpack.c.l.b16 %v374
    %v412 = vunpack.c.l.b16 %v375
    %v413 = vunpack.c.l.b16 %v376
    %v414 = vunpack.c.l.b16 %v377
    %v415 = vunpack.c.l.b16 %v378
    %v416 = vunpack.c.l.b16 %v379
    %v417 = vunpack.c.l.b16 %v380
    %v418 = vunpack.c.l.b16 %v381
    %v419 = vunpack.c.l.b16 %v382
    %v420 = vpack.c.b16 %v405, %v404
    %v421 = vpack.c.b16 %v407, %v406
    %v422 = vpack.c.b16 %v409, %v408
    %v423 = vpack.c.b16 %v411, %v410
    %v424 = vpack.c.b16 %v413, %v412
    %v425 = vpack.c.b16 %v415, %v414
    %v426 = vpack.c.b16 %v417, %v416
    %v427 = vpack.c.b16 %v419, %v418
    %436 = vmatprep.subr.bf16.mxu0 0
    %437 = vmatpush1.bf16.msra.mxu0 %v427
    %438 = vmatprep.subr.bf16.mxu0 0
    %439 = vmatpush1.bf16.msra.mxu0 %v426
    %440 = vmatprep.subr.bf16.mxu0 0
    %441 = vmatpush1.bf16.msra.mxu0 %v425
    %442 = vmatprep.subr.bf16.mxu0 0
    %443 = vmatpush1.bf16.msra.mxu0 %v424
    %444 = vmatprep.subr.bf16.mxu0 0
    %445 = vmatpush1.bf16.msra.mxu0 %v423
    %446 = vmatprep.subr.bf16.mxu0 0
    %447 = vmatpush1.bf16.msra.mxu0 %v422
    %448 = vmatprep.subr.bf16.mxu0 0
    %449 = vmatpush1.bf16.msra.mxu0 %v421
    %450 = vmatprep.subr.bf16.mxu0 0
    %451 = vmatpush1.bf16.msra.mxu0 %v420
    %452 = vmatprep.subr.bf16.mxu0 0
    %453 = vmatpush2.bf16.msra.mxu0 0
    %454 = vmatprep.subr.bf16.mxu0 0
    %455 = vmatpush2.bf16.msra.mxu0 0
    %456 = vmatprep.subr.bf16.mxu0 0
    %457 = vmatpush2.bf16.msra.mxu0 0
    %458 = vmatprep.subr.bf16.mxu0 0
    %459 = vmatpush2.bf16.msra.mxu0 0
    %460 = vmatprep.subr.bf16.mxu0 0
    %461 = vmatpush2.bf16.msra.mxu0 0
    %462 = vmatprep.subr.bf16.mxu0 0
    %463 = vmatpush2.bf16.msra.mxu0 0
    %464 = vmatprep.subr.bf16.mxu0 0
    %465 = vmatpush2.bf16.msra.mxu0 0
    %466 = vmatprep.subr.bf16.mxu0 0
    %467 = vmatpush2.bf16.msra.mxu0 0
    %468 = vmatprep.mubr.bf16.mxu0 0
    %469 = vmatmul.mubr.bf16.gmra.mxu0 %v365
    %v470 = vpop.f32.mrf.mxu0
    %v471 = vadd.f32 %v387, %v470
    %v472 = vpop.f32.mrf.mxu0
    %v473 = vpop.f32.mrf.mxu0
    %v474 = vpop.f32.mrf.mxu0
    %475 = vdwg.mxu0
    %vm476 = vcmp.gt.f32.partialorder %v471, 0.0
    %v477 = vmul.f32 %v471, 0.2
    %v478 = vsel %vm476, %v471, %v477
    %v479 = vpack.c.bf16 %v478, %v478
    %s480 = scalar_lea.vmem [#allocation2], 192
    %v481 = vld [vmem:[%s480] sm:$0xf]
    %v482 = vld [vmem:[%s480 + $0x4] sm:$0xf]
    %v483 = vld [vmem:[%s480 + $0x8] sm:$0xf]
    %v484 = vld [vmem:[%s480 + $0xc] sm:$0xf]
    %v485 = vld [vmem:[%s480 + $0x10] sm:$0xf]
    %v486 = vld [vmem:[%s480 + $0x14] sm:$0xf]
    %v487 = vld [vmem:[%s480 + $0x18] sm:$0xf]
    %v488 = vld [vmem:[%s480 + $0x1c] sm:$0xf]
    %v489 = vld [vmem:[%s480 + $0x20] sm:$0xf]
    %v490 = vld [vmem:[%s480 + $0x24] sm:$0xf]
    %v491 = vld [vmem:[%s480 + $0x28] sm:$0xf]
    %v492 = vld [vmem:[%s480 + $0x2c] sm:$0xf]
    %v493 = vld [vmem:[%s480 + $0x30] sm:$0xf]
    %v494 = vld [vmem:[%s480 + $0x34] sm:$0xf]
    %v495 = vld [vmem:[%s480 + $0x38] sm:$0xf]
    %v496 = vld [vmem:[%s480 + $0x3c] sm:$0xf]
    %v497 = vld [vmem:[%s4 + $0x4] sm:$0x1]
    %v498 = vlaneseq
    %v499 = vshrl.u32 %v498, 7
    %v500 = vsub.s32 0, %v499
    %v501 = vrot.slane %v497, %v500
    %v518 = vunpack.c.l.b16 %v481
    %v519 = vunpack.c.l.b16 %v482
    %v520 = vunpack.c.l.b16 %v483
    %v521 = vunpack.c.l.b16 %v484
    %v522 = vunpack.c.l.b16 %v485
    %v523 = vunpack.c.l.b16 %v486
    %v524 = vunpack.c.l.b16 %v487
    %v525 = vunpack.c.l.b16 %v488
    %v526 = vunpack.c.l.b16 %v489
    %v527 = vunpack.c.l.b16 %v490
    %v528 = vunpack.c.l.b16 %v491
    %v529 = vunpack.c.l.b16 %v492
    %v530 = vunpack.c.l.b16 %v493
    %v531 = vunpack.c.l.b16 %v494
    %v532 = vunpack.c.l.b16 %v495
    %v533 = vunpack.c.l.b16 %v496
    %v534 = vpack.c.b16 %v519, %v518
    %v535 = vpack.c.b16 %v521, %v520
    %v536 = vpack.c.b16 %v523, %v522
    %v537 = vpack.c.b16 %v525, %v524
    %v538 = vpack.c.b16 %v527, %v526
    %v539 = vpack.c.b16 %v529, %v528
    %v540 = vpack.c.b16 %v531, %v530
    %v541 = vpack.c.b16 %v533, %v532
    %550 = vmatprep.subr.bf16.mxu0 0
    %551 = vmatpush1.bf16.msra.mxu0 %v541
    %552 = vmatprep.subr.bf16.mxu0 0
    %553 = vmatpush1.bf16.msra.mxu0 %v540
    %554 = vmatprep.subr.bf16.mxu0 0
    %555 = vmatpush1.bf16.msra.mxu0 %v539
    %556 = vmatprep.subr.bf16.mxu0 0
    %557 = vmatpush1.bf16.msra.mxu0 %v538
    %558 = vmatprep.subr.bf16.mxu0 0
    %559 = vmatpush1.bf16.msra.mxu0 %v537
    %560 = vmatprep.subr.bf16.mxu0 0
    %561 = vmatpush1.bf16.msra.mxu0 %v536
    %562 = vmatprep.subr.bf16.mxu0 0
    %563 = vmatpush1.bf16.msra.mxu0 %v535
    %564 = vmatprep.subr.bf16.mxu0 0
    %565 = vmatpush1.bf16.msra.mxu0 %v534
    %566 = vmatprep.subr.bf16.mxu0 0
    %567 = vmatpush2.bf16.msra.mxu0 0
    %568 = vmatprep.subr.bf16.mxu0 0
    %569 = vmatpush2.bf16.msra.mxu0 0
    %570 = vmatprep.subr.bf16.mxu0 0
    %571 = vmatpush2.bf16.msra.mxu0 0
    %572 = vmatprep.subr.bf16.mxu0 0
    %573 = vmatpush2.bf16.msra.mxu0 0
    %574 = vmatprep.subr.bf16.mxu0 0
    %575 = vmatpush2.bf16.msra.mxu0 0
    %576 = vmatprep.subr.bf16.mxu0 0
    %577 = vmatpush2.bf16.msra.mxu0 0
    %578 = vmatprep.subr.bf16.mxu0 0
    %579 = vmatpush2.bf16.msra.mxu0 0
    %580 = vmatprep.subr.bf16.mxu0 0
    %581 = vmatpush2.bf16.msra.mxu0 0
    %582 = vmatprep.mubr.bf16.mxu0 0
    %583 = vmatmul.mubr.bf16.gmra.mxu0 %v479
    %v584 = vpop.f32.mrf.mxu0
    %v585 = vadd.f32 %v501, %v584
    %v586 = vpop.f32.mrf.mxu0
    %v587 = vpop.f32.mrf.mxu0
    %v588 = vpop.f32.mrf.mxu0
    %589 = vdwg.mxu0
    %vm590 = vcmp.gt.f32.partialorder %v585, 0.0
    %v591 = vmul.f32 %v585, 0.2
    %v592 = vsel %vm590, %v585, %v591
    %593 = vxpose.xlu0.b32.start [1/16] %v592, 128
    %594 = vxpose.xlu0.b32.cont [2/16] 0.0, 128
    %595 = vxpose.xlu0.b32.cont [3/16] 0.0, 128
    %596 = vxpose.xlu0.b32.cont [4/16] 0.0, 128
    %597 = vxpose.xlu0.b32.cont [5/16] 0.0, 128
    %598 = vxpose.xlu0.b32.cont [6/16] 0.0, 128
    %599 = vxpose.xlu0.b32.cont [7/16] 0.0, 128
    %600 = vxpose.xlu0.b32.cont [8/16] 0.0, 128
    %601 = vxpose.xlu0.b32.cont [9/16] 0.0, 128
    %602 = vxpose.xlu0.b32.cont [10/16] 0.0, 128
    %603 = vxpose.xlu0.b32.cont [11/16] 0.0, 128
    %604 = vxpose.xlu0.b32.cont [12/16] 0.0, 128
    %605 = vxpose.xlu0.b32.cont [13/16] 0.0, 128
    %606 = vxpose.xlu0.b32.cont [14/16] 0.0, 128
    %607 = vxpose.xlu0.b32.cont [15/16] 0.0, 128
    %608 = vxpose.xlu0.b32.end [16/16] 0.0, 128
    %v609 = vpop.trf.xlu0
    %v610 = vpop.trf.xlu0
    %v611 = vpop.trf.xlu0
    %v612 = vpop.trf.xlu0
    %v613 = vpop.trf.xlu0
    %v614 = vpop.trf.xlu0
    %v615 = vpop.trf.xlu0
    %v616 = vpop.trf.xlu0
    %v617 = vpop.trf.xlu0
    %v618 = vpop.trf.xlu0
    %v619 = vpop.trf.xlu0
    %v620 = vpop.trf.xlu0
    %v621 = vpop.trf.xlu0
    %v622 = vpop.trf.xlu0
    %v623 = vpop.trf.xlu0
    %v624 = vpop.trf.xlu0
    %v625 = vld [vmem:[%s3] sm:$0xff]
    %v626 = vld [vmem:[%s3 + $0x8] sm:$0xff]
    %v627 = vld [vmem:[%s3 + $0x10] sm:$0xff]
    %v628 = vld [vmem:[%s3 + $0x18] sm:$0xff]
    %v629 = vld [vmem:[%s3 + $0x20] sm:$0xff]
    %v630 = vld [vmem:[%s3 + $0x28] sm:$0xff]
    %v631 = vld [vmem:[%s3 + $0x30] sm:$0xff]
    %v632 = vld [vmem:[%s3 + $0x38] sm:$0xff]
    %v633 = vld [vmem:[%s3 + $0x40] sm:$0xff]
    %v634 = vld [vmem:[%s3 + $0x48] sm:$0xff]
    %v635 = vld [vmem:[%s3 + $0x50] sm:$0xff]
    %v636 = vld [vmem:[%s3 + $0x58] sm:$0xff]
    %v637 = vld [vmem:[%s3 + $0x60] sm:$0xff]
    %v638 = vld [vmem:[%s3 + $0x68] sm:$0xff]
    %v639 = vld [vmem:[%s3 + $0x70] sm:$0xff]
    %v640 = vld [vmem:[%s3 + $0x78] sm:$0xff]
    %642 = vset.pattern.permute.xlu0 0
    %643 = vperm.xlu0 %642, %v625
    %v644 = vpop.permute.xlu0 %643
    %647 = vset.pattern.permute.xlu0 0
    %648 = vperm.xlu0 %647, %v626
    %v649 = vpop.permute.xlu0 %648
    %652 = vset.pattern.permute.xlu0 0
    %653 = vperm.xlu0 %652, %v627
    %v654 = vpop.permute.xlu0 %653
    %657 = vset.pattern.permute.xlu0 0
    %658 = vperm.xlu0 %657, %v628
    %v659 = vpop.permute.xlu0 %658
    %662 = vset.pattern.permute.xlu0 0
    %663 = vperm.xlu0 %662, %v629
    %v664 = vpop.permute.xlu0 %663
    %667 = vset.pattern.permute.xlu0 0
    %668 = vperm.xlu0 %667, %v630
    %v669 = vpop.permute.xlu0 %668
    %672 = vset.pattern.permute.xlu0 0
    %673 = vperm.xlu0 %672, %v631
    %v674 = vpop.permute.xlu0 %673
    %677 = vset.pattern.permute.xlu0 0
    %678 = vperm.xlu0 %677, %v632
    %v679 = vpop.permute.xlu0 %678
    %682 = vset.pattern.permute.xlu0 0
    %683 = vperm.xlu0 %682, %v633
    %v684 = vpop.permute.xlu0 %683
    %687 = vset.pattern.permute.xlu0 0
    %688 = vperm.xlu0 %687, %v634
    %v689 = vpop.permute.xlu0 %688
    %692 = vset.pattern.permute.xlu0 0
    %693 = vperm.xlu0 %692, %v635
    %v694 = vpop.permute.xlu0 %693
    %697 = vset.pattern.permute.xlu0 0
    %698 = vperm.xlu0 %697, %v636
    %v699 = vpop.permute.xlu0 %698
    %702 = vset.pattern.permute.xlu0 0
    %703 = vperm.xlu0 %702, %v637
    %v704 = vpop.permute.xlu0 %703
    %707 = vset.pattern.permute.xlu0 0
    %708 = vperm.xlu0 %707, %v638
    %v709 = vpop.permute.xlu0 %708
    %712 = vset.pattern.permute.xlu0 0
    %713 = vperm.xlu0 %712, %v639
    %v714 = vpop.permute.xlu0 %713
    %717 = vset.pattern.permute.xlu0 0
    %718 = vperm.xlu0 %717, %v640
    %v719 = vpop.permute.xlu0 %718
    %v721 = vmul.f32 %v609, %v644
    %v722 = vmul.f32 %v610, %v649
    %v723 = vmul.f32 %v611, %v654
    %v724 = vmul.f32 %v612, %v659
    %v725 = vmul.f32 %v613, %v664
    %v726 = vmul.f32 %v614, %v669
    %v727 = vmul.f32 %v615, %v674
    %v728 = vmul.f32 %v616, %v679
    %v729 = vmul.f32 %v617, %v684
    %v730 = vmul.f32 %v618, %v689
    %v731 = vmul.f32 %v619, %v694
    %v732 = vmul.f32 %v620, %v699
    %v733 = vmul.f32 %v621, %v704
    %v734 = vmul.f32 %v622, %v709
    %v735 = vmul.f32 %v623, %v714
    %v736 = vmul.f32 %v624, %v719
    %vm737 = vcmask 64512
    %v738 = vsel %vm737, %v721, 0.0
    %v739 = vsel %vm737, %v722, 0.0
    %v740 = vadd.f32 %v738, %v739
    %v741 = vsel %vm737, %v723, 0.0
    %v742 = vadd.f32 %v740, %v741
    %v743 = vsel %vm737, %v724, 0.0
    %v744 = vadd.f32 %v742, %v743
    %v745 = vsel %vm737, %v725, 0.0
    %v746 = vadd.f32 %v744, %v745
    %v747 = vsel %vm737, %v726, 0.0
    %v748 = vadd.f32 %v746, %v747
    %v749 = vsel %vm737, %v727, 0.0
    %v750 = vadd.f32 %v748, %v749
    %v751 = vsel %vm737, %v728, 0.0
    %v752 = vadd.f32 %v750, %v751
    %v753 = vsel %vm737, %v729, 0.0
    %v754 = vadd.f32 %v752, %v753
    %v755 = vsel %vm737, %v730, 0.0
    %v756 = vadd.f32 %v754, %v755
    %v757 = vsel %vm737, %v731, 0.0
    %v758 = vadd.f32 %v756, %v757
    %v759 = vsel %vm737, %v732, 0.0
    %v760 = vadd.f32 %v758, %v759
    %v761 = vsel %vm737, %v733, 0.0
    %v762 = vadd.f32 %v760, %v761
    %v763 = vsel %vm737, %v734, 0.0
    %v764 = vadd.f32 %v762, %v763
    %v765 = vsel %vm737, %v735, 0.0
    %v766 = vadd.f32 %v764, %v765
    %v767 = vsel %vm737, %v736, 0.0
    %v768 = vadd.f32 %v766, %v767
    %v769 = vrot.slane %v768, 4
    %v770 = vadd.f32 %v768, %v769
    %v771 = vrot.slane %v770, 2
    %v772 = vadd.f32 %v770, %v771
    %v773 = vrot.slane %v772, 1
    %v774 = vadd.f32 %v772, %v773
    %v775 = vld [vmem:[%s4 + $0x5] sm:$0x1]
    %777 = vset.pattern.permute.xlu0 0
    %778 = vperm.xlu0 %777, %v775
    %v779 = vpop.permute.xlu0 %778
    %v781 = vadd.f32 %v774, %v779
    %v782 = vmul.f32 %v781, %v781
    %vm783 = vcmask 57344
    %784 = vst.msk [vmem:[#allocation5] sm:$0x1] %vm783, %v782
    // Predicated region
    $region26: #{tpu_custom_call.1} parent=1 // pred_check
      _
    $region27: #{tpu_custom_call.1} parent=1 // pred_check_branch
      %786 = sbr.rel (0) target = $region29
    $region28: #{tpu_custom_call.1} parent=1 // pred_region
      %s788 = ssub.s32 16, 16
      %789 = vsyncadd [#allocation4], %s788
      %s791 = sshll.u32 [#allocation5], 4
      %s792 = int_to_ptr.vmem [resolvable:$true] %s791
      %794 = dma.vmem_to_hbm [thread:$0]  %s792, 16, %s5, [#allocation4]
    $region29: #{tpu_custom_call.1} parent=1 // pred_fallthru
      _
    // Predicated region
    $region30: #{tpu_custom_call.1} parent=1 // pred_check
      _
    $region31: #{tpu_custom_call.1} parent=1 // pred_check_branch
      %796 = sbr.rel (0) target = $region33
    $region32: #{tpu_custom_call.1} parent=1 // pred_region
      %797 = dma.done [#allocation4], 16
    $region33: #{tpu_custom_call.1} parent=1 // pred_fallthru
      _
    %798 = vsyncpa [#allocation3], 1
    %799 = vsyncpa [#allocation4], 1

</llo_original>
